<compile_context>
chip_gen: v5e
topology: v5e:2x2
jax: 0.10.0
libtpu: 0.0.40
codegen_flags: <defaults>
</compile_context>

<pallas_src>
import functools

import jax
import jax.numpy as jnp
from jax.experimental import pallas as pl
from jax.experimental.pallas import tpu as pltpu

K = 4          # kernel size of both convs
LANE = 128     # TPU lane width: keep matmul N a multiple
NCORES = 2     # leading "parallel" split of the up-conv grid (v7x megacore)


def _round_up(x, m):
    return (x + m - 1) // m * m


@functools.lru_cache(maxsize=None)
def _hw_config():
    """(vmem_limit_bytes, default block_m) from the running chip's VMEM size."""
    try:
        cap = int(pltpu.get_tpu_info().vmem_capacity_bytes)
    except Exception:
        cap = 64 * 1024 * 1024                  # conservative: assume v7x-sized VMEM
    if cap >= 100 * 1024 * 1024:                # v5e / v6e: 128 MiB VMEM per core
        return 96 * 1024 * 1024, 512
    return 48 * 1024 * 1024, 256                # v7x: 64 MiB VMEM per core


@functools.lru_cache(maxsize=None)
def _single_buffer_ok():
    """Feature-probe pl.Buffered(1) pipeline_mode (constant-weight single buffering)."""
    def k(x_ref, o_ref):
        o_ref[...] = x_ref[...] + 1.0
    try:
        f = pl.pallas_call(
            k,
            out_shape=jax.ShapeDtypeStruct((16, 128), jnp.float32),
            grid=(2,),
            in_specs=[pl.BlockSpec((8, 128), lambda i: (i, 0),
                                   pipeline_mode=pl.Buffered(1))],
            out_specs=pl.BlockSpec((8, 128), lambda i: (i, 0)))
        jax.block_until_ready(f(jnp.zeros((16, 128), jnp.float32)))
        return True
    except Exception:
        return False


def _weight_spec(shape):
    """BlockSpec for a grid-invariant (constant index) weight operand."""
    idx = lambda *_: (0,) * len(shape)
    if _single_buffer_ok():
        return pl.BlockSpec(shape, idx, pipeline_mode=pl.Buffered(1))
    return pl.BlockSpec(shape, idx)


# ----------------------------------------------------------------------------
# Pallas kernels
# ----------------------------------------------------------------------------
def _conv_relu_kernel(p_ref, w_ref, o_ref):
    """Down path: conv-as-matmul (LeakyReLU folded upstream) + fused uRelu.
    bf16 inputs, f32 MXU accumulation, bf16 lane-dense output tile."""
    y = jnp.dot(p_ref[...], w_ref[...], preferred_element_type=jnp.float32)
    o_ref[...] = jnp.maximum(y, 0.0).astype(o_ref.dtype)


def _upconv_stats_kernel(p_ref, w_ref, y_ref, sum_ref, ssq_ref):
    """Up path: phase-decomposed ConvTranspose as matmul.  y is written back in
    bf16; per-column sum / sum-of-squares are accumulated in f32 across the
    inner ("arbitrary") grid axis into the per-core accumulator slot."""
    y = jnp.dot(p_ref[...], w_ref[...], preferred_element_type=jnp.float32)
    y_ref[...] = y.astype(y_ref.dtype)          # bf16 writeback: half HBM traffic

    @pl.when(pl.program_id(1) == 0)
    def _init():
        sum_ref[...] = jnp.zeros_like(sum_ref)
        ssq_ref[...] = jnp.zeros_like(ssq_ref)

    # f32 stats from the un-rounded accumulator; broadcast into the 8-row slot.
    sum_ref[...] += jnp.sum(y, axis=0, keepdims=True)
    ssq_ref[...] += jnp.sum(y * y, axis=0, keepdims=True)


# ----------------------------------------------------------------------------
# Layout plumbing (XLA side)
# ----------------------------------------------------------------------------
def _extract_patches(x_nhwc, k, stride, pad):
    """im2col: [B,H,W,C] -> [B*Ho*Wo, k*k*C], column order (ki, kj, c)."""
    x = jnp.pad(x_nhwc, ((0, 0), (pad, pad), (pad, pad), (0, 0)))
    B, H, W, C = x.shape
    Ho = (H - k) // stride + 1
    Wo = (W - k) // stride + 1
    cols = []
    for i in range(k):
        for j in range(k):
            cols.append(x[:, i:i + stride * Ho:stride, j:j + stride * Wo:stride, :])
    patches = jnp.stack(cols, axis=3)                 # [B, Ho, Wo, k*k, C]
    return patches.reshape(B * Ho * Wo, k * k * C), (Ho, Wo)


def _down_weight_matrix(Wd, n_pad):
    # Conv2d weight [O=inner, I=outer, kh, kw] -> [kh*kw*I, O], zero-pad N.
    O, I = Wd.shape[0], Wd.shape[1]
    w = jnp.transpose(Wd, (2, 3, 1, 0)).reshape(K * K * I, O)
    return jnp.pad(w, ((0, 0), (0, n_pad - O))).astype(jnp.bfloat16)


def _up_phase_weight_matrix(Wt, n_pad):
    """Phase decomposition of ConvTranspose2d(k=4, s=2, p=1).

    Each output phase (py, px) only sees a 2x2 sub-kernel applied to a 3x3
    window of the un-dilated input h.  Build a combined [3*3*Ci, 2*2*Co]
    matrix that produces all 4 phases with one matmul (no zero dilation)."""
    Ci, Co = Wt.shape[0], Wt.shape[1]
    # equivalent direct-conv weight: spatially flipped, in/out swapped.
    Wc = jnp.transpose(jnp.flip(Wt, axis=(2, 3)), (1, 0, 2, 3))   # [Co, Ci, 4, 4]
    # (3x3 window index, output phase) -> 4x4 kernel tap (same map rows/cols)
    tap = {(0, 0): 0, (1, 0): 2, (1, 1): 1, (2, 1): 3}
    w = jnp.zeros((3, 3, Ci, 2, 2, Co), jnp.float32)
    for (r, py), ki in tap.items():
        for (s, px), kj in tap.items():
            w = w.at[r, s, :, py, px, :].set(jnp.transpose(Wc[:, :, ki, kj]))
    w = w.reshape(9 * Ci, 4 * Co)
    return jnp.pad(w, ((0, 0), (0, n_pad - 4 * Co))).astype(jnp.bfloat16)


# ----------------------------------------------------------------------------
# Tiled pallas_call wrappers
# ----------------------------------------------------------------------------
def _tiled_conv_relu(p, w, block_m, vmem_limit):
    M, Kd = p.shape
    N = w.shape[1]
    Mp = _round_up(M, block_m)
    if Mp != M:
        p = jnp.pad(p, ((0, Mp - M), (0, 0)))
    grid = (Mp // block_m,)
    return pl.pallas_call(
        _conv_relu_kernel,
        out_shape=jax.ShapeDtypeStruct((Mp, N), jnp.bfloat16),
        grid=grid,
        in_specs=[pl.BlockSpec((block_m, Kd), lambda i: (i, 0)),
                  _weight_spec((Kd, N))],
        out_specs=pl.BlockSpec((block_m, N), lambda i: (i, 0)),
        compiler_params=pltpu.CompilerParams(
            dimension_semantics=("parallel",),
            vmem_limit_bytes=vmem_limit),
        cost_estimate=pl.CostEstimate(
            flops=2 * Mp * Kd * N, transcendentals=0,
            bytes_accessed=(Mp * Kd + Kd * N + Mp * N) * 2),
    )(p, w)


def _tiled_upconv_stats(p, w, block_m, vmem_limit):
    M, Ku = p.shape
    N = w.shape[1]
    Mp = _round_up(M, NCORES * block_m)
    if Mp != M:
        p = jnp.pad(p, ((0, Mp - M), (0, 0)))
    T = Mp // (NCORES * block_m)

    y4, sums, ssqs = pl.pallas_call(
        _upconv_stats_kernel,
        out_shape=(jax.ShapeDtypeStruct((Mp, N), jnp.bfloat16),
                   jax.ShapeDtypeStruct((NCORES * 8, N), jnp.float32),
                   jax.ShapeDtypeStruct((NCORES * 8, N), jnp.float32)),
        grid=(NCORES, T),
        in_specs=[pl.BlockSpec((block_m, Ku), lambda c, t: (c * T + t, 0)),
                  _weight_spec((Ku, N))],
        out_specs=(pl.BlockSpec((block_m, N), lambda c, t: (c * T + t, 0)),
                   # per-core accumulator slot (8 identical rows, 8-sublane tile)
                   pl.BlockSpec((8, N), lambda c, t: (c, 0)),
                   pl.BlockSpec((8, N), lambda c, t: (c, 0))),
        compiler_params=pltpu.CompilerParams(
            # core axis parallel (v7x megacore), reduction axis sequential.
            dimension_semantics=("parallel", "arbitrary"),
            vmem_limit_bytes=vmem_limit),
        cost_estimate=pl.CostEstimate(
            flops=2 * Mp * Ku * N + 3 * Mp * N, transcendentals=0,
            bytes_accessed=(Mp * Ku + Ku * N + Mp * N) * 2 + 2 * NCORES * 8 * N * 4),
    )(p, w)
    col_sum = sums.reshape(NCORES, 8, N)[:, 0, :].sum(axis=0)
    col_ssq = ssqs.reshape(NCORES, 8, N)[:, 0, :].sum(axis=0)
    return y4, col_sum, col_ssq


# ----------------------------------------------------------------------------
# Public forward (NCHW in / NCHW out, PyTorch convention)
# ----------------------------------------------------------------------------
def unet_innermost_forward(x_nchw, Wd, Wt, gamma, beta, *, block_m=None, eps=1e-5):
    """x_nchw: [B, outer_nc, H, W]
    Wd   : [inner_nc, outer_nc, 4, 4]  (Conv2d OIHW weight)
    Wt   : [inner_nc, outer_nc, 4, 4]  (ConvTranspose2d (in,out,kh,kw) weight)
    gamma, beta : [outer_nc]           (BatchNorm2d affine params)
    """
    vmem_limit, default_bm = _hw_config()
    if block_m is None:
        block_m = default_bm

    B, Co, H, W = x_nchw.shape
    Ci = Wd.shape[0]                               # inner_nc
    assert H % 2 == 0 and W % 2 == 0

    x_nhwc = jnp.transpose(x_nchw, (0, 2, 3, 1)).astype(jnp.float32)

    # dRelu: LeakyReLU(0.2) applied once on x (commutes with zero padding and
    # patch replication -> no 16x redundant work on im2col'd data).
    x_act = jnp.where(x_nhwc >= 0.0, x_nhwc, 0.2 * x_nhwc).astype(jnp.bfloat16)

    # ---- down: Conv2d(k4, s2, p1, bias=False) + fused uRelu -----------------
    n_d = _round_up(Ci, LANE)
    p_d, (Hh, Wh) = _extract_patches(x_act, K, stride=2, pad=1)
    wd_mat = _down_weight_matrix(Wd, n_d)
    M_d = B * Hh * Wh
    bm_d = min(block_m, _round_up(M_d, 16))        # 16: bf16 sublane tile
    h_flat = _tiled_conv_relu(p_d, wd_mat, bm_d, vmem_limit)    # [Mp_d, n_d] bf16
    h = h_flat[:M_d, :Ci].reshape(B, Hh, Wh, Ci)                # ReLU'd, bf16

    # ---- up: ConvTranspose2d(k4, s2, p1, bias=False), phase decomposed ------
    # TODO(synk): fuse down+up (keep h in VMEM) with in-kernel tap-accumulated
    # conv + halo DMA to eliminate the h writeback and the p_u im2col pass.
    n_u = _round_up(4 * Co, LANE)
    p_u, _ = _extract_patches(h, 3, stride=1, pad=1)            # [M_u, 9*Ci]
    wu_mat = _up_phase_weight_matrix(Wt, n_u)
    M_u = B * Hh * Wh
    bm_u = min(block_m, _round_up(M_u, 16))
    y4, col_sum, col_ssq = _tiled_upconv_stats(p_u, wu_mat, bm_u, vmem_limit)

    # ---- uNorm: BatchNorm2d(outer_nc), training-mode batch statistics -------
    # NOTE: the Mp-M zero-padded patch rows contribute exactly 0 to sum/ssq, so
    # the accumulators stay correct while `count` is the true pixel count.
    # TODO(synk): single-pass E[x^2]-E[x]^2 cancels badly when |mean| >> std;
    # use shifted/Welford accumulation if tighter accuracy is ever needed.
    count = jnp.float32(B * H * W)                              # = 4 * M_u pixels
    ch_sum = col_sum[:4 * Co].reshape(4, Co).sum(axis=0)
    ch_ssq = col_ssq[:4 * Co].reshape(4, Co).sum(axis=0)
    mean = ch_sum / count
    var = jnp.maximum(ch_ssq / count - mean * mean, 0.0)        # biased variance
    scale = gamma.astype(jnp.float32) * jax.lax.rsqrt(var + eps)
    shift = beta.astype(jnp.float32) - mean * scale

    # BN affine + 2x2 phase interleave + concat: left to XLA so the elementwise
    # scale/shift fuses into the layout ops (no separate HBM pass over y4).
    y = y4[:M_u, :4 * Co].astype(jnp.float32).reshape(B, Hh, Wh, 2, 2, Co)
    y = jnp.transpose(y, (0, 1, 3, 2, 4, 5)).reshape(B, H, W, Co)
    y = y * scale + shift

    # ---- skip: torch.cat([model(x), x], 1); single NHWC->NCHW at the end ----
    out_nhwc = jnp.concatenate([y, x_nhwc], axis=-1)
    return jnp.transpose(out_nhwc, (0, 3, 1, 2))


# ----------------------------------------------------------------------------
# Pure-JAX (f32) reference for the correctness check
# ----------------------------------------------------------------------------
def _reference(x, Wd, Wt, gamma, beta):
    h = jnp.where(x >= 0, x, 0.2 * x)
    h = jax.lax.conv_general_dilated(h, Wd, window_strides=(2, 2),
                                     padding=((1, 1), (1, 1)),
                                     dimension_numbers=('NCHW', 'OIHW', 'NCHW'))
    h = jnp.maximum(h, 0.0)
    Wc = jnp.transpose(jnp.flip(Wt, axis=(2, 3)), (1, 0, 2, 3))
    y = jax.lax.conv_general_dilated(h, Wc, window_strides=(1, 1),
                                     padding=((2, 2), (2, 2)),
                                     lhs_dilation=(2, 2),
                                     dimension_numbers=('NCHW', 'OIHW', 'NCHW'))
    mean = jnp.mean(y, axis=(0, 2, 3), keepdims=True)
    var = jnp.mean((y - mean) ** 2, axis=(0, 2, 3), keepdims=True)
    y = (y - mean) / jnp.sqrt(var + 1e-5)
    y = y * gamma.reshape(1, -1, 1, 1) + beta.reshape(1, -1, 1, 1)
    return jnp.concatenate([y, x], axis=1)


if __name__ == "__main__":
    key = jax.random.PRNGKey(0)
    k1, k2, k3, k4, k5 = jax.random.split(key, 5)
    B, outer_nc, inner_nc, S = 2, 4, 8, 16

    x = jax.random.normal(k1, (B, outer_nc, S, S), jnp.float32)
    # Conv2d(outer_nc -> inner_nc, 4): weight [inner, outer, 4, 4], bias=False
    Wd = 0.1 * jax.random.normal(k2, (inner_nc, outer_nc, K, K), jnp.float32)
    # ConvTranspose2d(inner_nc -> outer_nc, 4): weight [inner, outer, 4, 4]
    Wt = 0.1 * jax.random.normal(k3, (inner_nc, outer_nc, K, K), jnp.float32)
    # BatchNorm2d(outer_nc) affine params
    gamma = 1.0 + 0.1 * jax.random.normal(k4, (outer_nc,), jnp.float32)
    beta = 0.1 * jax.random.normal(k5, (outer_nc,), jnp.float32)

    # block_m=64 so the tiny test shapes still exercise a multi-step grid and
    # both slots of the per-core stats accumulator.
    fwd = jax.jit(functools.partial(unet_innermost_forward, block_m=64))
    out = jax.block_until_ready(fwd(x, Wd, Wt, gamma, beta))

    assert out.shape == (B, 2 * outer_nc, S, S), out.shape
    ref = _reference(x, Wd, Wt, gamma, beta)
    max_err = float(jnp.max(jnp.abs(out - ref)))
    mean_err = float(jnp.mean(jnp.abs(out - ref)))
    # bf16 MXU inputs + bf16 y4 intermediate, f32 accumulation / BN statistics
    assert max_err < 1e-1 and mean_err < 2e-2, (max_err, mean_err)

    print("KERNEL_OK")
</pallas_src>

<mosaic_0001>
module attributes {stable_mosaic.version = 11 : i64} {
  func.func @_conv_relu_kernel(%arg0: i32, %arg1: memref<64x64xbf16, #tpu.memory_space<vmem>>, %arg2: memref<64x128xbf16, #tpu.memory_space<vmem>>, %arg3: memref<64x128xbf16, #tpu.memory_space<vmem>>) attributes {dimension_semantics = [#tpu.dimension_semantics<parallel>], iteration_bounds = array<i64: 2>, scalar_prefetch = 0 : i64, scratch_operands = 0 : i64, tpu.core_type = #tpu.core_type<tc>, window_params = [{transform_indices = @transform_0, window_bounds = array<i64: 64, 64>}, {pipeline_mode = #tpu.pipeline_mode<synchronous>, transform_indices = @transform_1, window_bounds = array<i64: 64, 128>}, {transform_indices = @transform_2, window_bounds = array<i64: 64, 128>}]} {
    %c0 = arith.constant 0 : index
    %c0_0 = arith.constant 0 : index
    %0 = vector.load %arg1[%c0, %c0_0] : memref<64x64xbf16, #tpu.memory_space<vmem>>, vector<64x64xbf16>
    %c0_1 = arith.constant 0 : index
    %c0_2 = arith.constant 0 : index
    %1 = vector.load %arg2[%c0_1, %c0_2] : memref<64x128xbf16, #tpu.memory_space<vmem>>, vector<64x128xbf16>
    %cst = arith.constant dense<0.000000e+00> : vector<64x128xf32>
    %2 = tpu.matmul %0, %1, %cst {dimension_numbers = #tpu.dot_dimension_numbers<[1], [0], [0], [1], [0, 0, 1, 1], [], []>} : vector<64x64xbf16>, vector<64x128xbf16>, vector<64x128xf32> -> vector<64x128xf32>
    %cst_3 = arith.constant 0.000000e+00 : f32
    %3 = vector.broadcast %cst_3 : f32 to vector<64x128xf32>
    %4 = arith.maximumf %2, %3 : vector<64x128xf32>
    %5 = arith.truncf %4 : vector<64x128xf32> to vector<64x128xbf16>
    %c0_4 = arith.constant 0 : index
    %c0_5 = arith.constant 0 : index
    %6 = vector.load %arg3[%c0_4, %c0_5] : memref<64x128xbf16, #tpu.memory_space<vmem>>, vector<64x128xbf16>
    tpu.vector_store %arg3[%c0_4, %c0_5], %5 {strides = array<i32>} : memref<64x128xbf16, #tpu.memory_space<vmem>>, vector<64x128xbf16>,
    return
  }
  func.func @transform_0(%arg0: i32) -> (i32, i32) {
    %c0_i32 = arith.constant 0 : i32
    %c0_i32_0 = arith.constant 0 : i32
    return %arg0, %c0_i32 : i32, i32
  }
  func.func @transform_1(%arg0: i32) -> (i32, i32) {
    %c0_i32 = arith.constant 0 : i32
    %c0_i32_0 = arith.constant 0 : i32
    %c0_i32_1 = arith.constant 0 : i32
    return %c0_i32, %c0_i32_0 : i32, i32
  }
  func.func @transform_2(%arg0: i32) -> (i32, i32) {
    %c0_i32 = arith.constant 0 : i32
    %c0_i32_0 = arith.constant 0 : i32
    return %arg0, %c0_i32 : i32, i32
  }
}

module attributes {stable_mosaic.version = 11 : i64} {
  func.func @_upconv_stats_kernel(%arg0: i32, %arg1: i32, %arg2: memref<64x72xbf16, #tpu.memory_space<vmem>>, %arg3: memref<72x128xbf16, #tpu.memory_space<vmem>>, %arg4: memref<64x128xbf16, #tpu.memory_space<vmem>>, %arg5: memref<8x128xf32, #tpu.memory_space<vmem>>, %arg6: memref<8x128xf32, #tpu.memory_space<vmem>>) attributes {dimension_semantics = [#tpu.dimension_semantics<parallel>, #tpu.dimension_semantics<arbitrary>], iteration_bounds = array<i64: 2, 1>, scalar_prefetch = 0 : i64, scratch_operands = 0 : i64, tpu.core_type = #tpu.core_type<tc>, window_params = [{transform_indices = @transform_0, window_bounds = array<i64: 64, 72>}, {pipeline_mode = #tpu.pipeline_mode<synchronous>, transform_indices = @transform_1, window_bounds = array<i64: 72, 128>}, {transform_indices = @transform_2, window_bounds = array<i64: 64, 128>}, {transform_indices = @transform_3, window_bounds = array<i64: 8, 128>}, {transform_indices = @transform_4, window_bounds = array<i64: 8, 128>}]} {
    %c0 = arith.constant 0 : index
    %c0_0 = arith.constant 0 : index
    %0 = vector.load %arg2[%c0, %c0_0] : memref<64x72xbf16, #tpu.memory_space<vmem>>, vector<64x72xbf16>
    %c0_1 = arith.constant 0 : index
    %c0_2 = arith.constant 0 : index
    %1 = vector.load %arg3[%c0_1, %c0_2] : memref<72x128xbf16, #tpu.memory_space<vmem>>, vector<72x128xbf16>
    %cst = arith.constant dense<0.000000e+00> : vector<64x128xf32>
    %2 = tpu.matmul %0, %1, %cst {dimension_numbers = #tpu.dot_dimension_numbers<[1], [0], [0], [1], [0, 0, 1, 1], [], []>} : vector<64x72xbf16>, vector<72x128xbf16>, vector<64x128xf32> -> vector<64x128xf32>
    %3 = arith.truncf %2 : vector<64x128xf32> to vector<64x128xbf16>
    %c0_3 = arith.constant 0 : index
    %c0_4 = arith.constant 0 : index
    %4 = vector.load %arg4[%c0_3, %c0_4] : memref<64x128xbf16, #tpu.memory_space<vmem>>, vector<64x128xbf16>
    tpu.vector_store %arg4[%c0_3, %c0_4], %3 {strides = array<i32>} : memref<64x128xbf16, #tpu.memory_space<vmem>>, vector<64x128xbf16>,
    %c0_i32 = arith.constant 0 : i32
    %5 = arith.cmpi eq, %arg1, %c0_i32 : i32
    %6 = arith.extui %5 : i1 to i32
    %c0_i32_5 = arith.constant 0 : i32
    %7 = arith.cmpi ne, %6, %c0_i32_5 : i32
    scf.if %7 {
      %cst_16 = arith.constant 0.000000e+00 : f32
      %21 = vector.broadcast %cst_16 : f32 to vector<8x128xf32>
      %c0_17 = arith.constant 0 : index
      %c0_18 = arith.constant 0 : index
      %22 = vector.load %arg5[%c0_17, %c0_18] : memref<8x128xf32, #tpu.memory_space<vmem>>, vector<8x128xf32>
      tpu.vector_store %arg5[%c0_17, %c0_18], %21 {strides = array<i32>} : memref<8x128xf32, #tpu.memory_space<vmem>>, vector<8x128xf32>,
      %cst_19 = arith.constant 0.000000e+00 : f32
      %23 = vector.broadcast %cst_19 : f32 to vector<8x128xf32>
      %c0_20 = arith.constant 0 : index
      %c0_21 = arith.constant 0 : index
      %24 = vector.load %arg6[%c0_20, %c0_21] : memref<8x128xf32, #tpu.memory_space<vmem>>, vector<8x128xf32>
      tpu.vector_store %arg6[%c0_20, %c0_21], %23 {strides = array<i32>} : memref<8x128xf32, #tpu.memory_space<vmem>>, vector<8x128xf32>,
    } else {
    }
    %c0_6 = arith.constant 0 : index
    %c0_7 = arith.constant 0 : index
    %8 = vector.load %arg5[%c0_6, %c0_7] : memref<8x128xf32, #tpu.memory_space<vmem>>, vector<8x128xf32>
    %cst_8 = arith.constant dense<0.000000e+00> : vector<128xf32>
    %9 = vector.multi_reduction <add>, %2, %cst_8 [0] : vector<64x128xf32> to vector<128xf32>
    %10 = vector.shape_cast %9 : vector<128xf32> to vector<1x128xf32>
    %11 = vector.broadcast %10 : vector<1x128xf32> to vector<8x128xf32>
    %12 = arith.addf %8, %11 : vector<8x128xf32>
    %c0_9 = arith.constant 0 : index
    %c0_10 = arith.constant 0 : index
    %13 = vector.load %arg5[%c0_9, %c0_10] : memref<8x128xf32, #tpu.memory_space<vmem>>, vector<8x128xf32>
    tpu.vector_store %arg5[%c0_9, %c0_10], %12 {strides = array<i32>} : memref<8x128xf32, #tpu.memory_space<vmem>>, vector<8x128xf32>,
    %c0_11 = arith.constant 0 : index
    %c0_12 = arith.constant 0 : index
    %14 = vector.load %arg6[%c0_11, %c0_12] : memref<8x128xf32, #tpu.memory_space<vmem>>, vector<8x128xf32>
    %15 = arith.mulf %2, %2 : vector<64x128xf32>
    %cst_13 = arith.constant dense<0.000000e+00> : vector<128xf32>
    %16 = vector.multi_reduction <add>, %15, %cst_13 [0] : vector<64x128xf32> to vector<128xf32>
    %17 = vector.shape_cast %16 : vector<128xf32> to vector<1x128xf32>
    %18 = vector.broadcast %17 : vector<1x128xf32> to vector<8x128xf32>
    %19 = arith.addf %14, %18 : vector<8x128xf32>
    %c0_14 = arith.constant 0 : index
    %c0_15 = arith.constant 0 : index
    %20 = vector.load %arg6[%c0_14, %c0_15] : memref<8x128xf32, #tpu.memory_space<vmem>>, vector<8x128xf32>
    tpu.vector_store %arg6[%c0_14, %c0_15], %19 {strides = array<i32>} : memref<8x128xf32, #tpu.memory_space<vmem>>, vector<8x128xf32>,
    return
  }
  func.func @transform_0(%arg0: i32, %arg1: i32) -> (i32, i32) {
    %c1_i32 = arith.constant 1 : i32
    %0 = arith.muli %arg0, %c1_i32 : i32
    %1 = arith.addi %0, %arg1 : i32
    %c0_i32 = arith.constant 0 : i32
    %c0_i32_0 = arith.constant 0 : i32
    return %1, %c0_i32 : i32, i32
  }
  func.func @transform_1(%arg0: i32, %arg1: i32) -> (i32, i32) {
    %c0_i32 = arith.constant 0 : i32
    %c0_i32_0 = arith.constant 0 : i32
    %c0_i32_1 = arith.constant 0 : i32
    return %c0_i32, %c0_i32_0 : i32, i32
  }
  func.func @transform_2(%arg0: i32, %arg1: i32) -> (i32, i32) {
    %c1_i32 = arith.constant 1 : i32
    %0 = arith.muli %arg0, %c1_i32 : i32
    %1 = arith.addi %0, %arg1 : i32
    %c0_i32 = arith.constant 0 : i32
    %c0_i32_0 = arith.constant 0 : i32
    return %1, %c0_i32 : i32, i32
  }
  func.func @transform_3(%arg0: i32, %arg1: i32) -> (i32, i32) {
    %c0_i32 = arith.constant 0 : i32
    %c0_i32_0 = arith.constant 0 : i32
    return %arg0, %c0_i32 : i32, i32
  }
  func.func @transform_4(%arg0: i32, %arg1: i32) -> (i32, i32) {
    %c0_i32 = arith.constant 0 : i32
    %c0_i32_0 = arith.constant 0 : i32
    return %arg0, %c0_i32 : i32, i32
  }
}

</mosaic_0001>

<llo_original>
// kernel: unet_innermost_forward.2
$region0: #{unet_innermost_forward.2}
  #allocation0 [shape = 'u32[]', space=smem, size = 0x4, offset = 0x4, fixed_abs, tag = 'smem constant byte address 0x4 - core index']
  #allocation1 [shape = 'u32[72,128]{1,0:T(1,128)}', space=vmem, size = 0x9000, scoped, tag = 'internal scratch']
  %s0 = inlined_call_operand.vmem [shape: bf16[128,64], index: 0, kind: input, shape index: {}]
  %s1 = inlined_call_operand.vmem [shape: bf16[64,128], index: 1, kind: input, shape index: {}]
  %s2 = inlined_call_operand.vmem [shape: bf16[128,128], index: 2, kind: output, shape index: {}]
  %s3 = sld [smem:[#allocation0]]
  $region41: #{unet_innermost_forward.2} parent=0
    _
  %s5 = ssub.s32 1, %s3
  %s6 = scalar_select 0, %s5, %s3
  loop: start=0, step=1, limit=4
  $region2: #{unet_innermost_forward.2} parent=0 // loop_pre_header
    _
  $region3: #{unet_innermost_forward.2} parent=0 // loop_header
    %s8 = sphi 0, %s12
    %p9 = scmp.ge.s32.totalorder %s8, 4
    %s18 = sphi 0, %s20
    %s21 = sphi 0, %s18
    %s22 = sphi 0, %s21
    %s38 = sphi 0, %s22
    %s42 = sphi 0, %s42
    %s44 = sphi 0, %s42
    %s45 = sphi 0, %s44
    %s59 = sphi 0, %s45
    %s65 = sphi 0, %s67
    %s68 = sphi 0, %s65
    %s69 = sphi 0, %s68
    %s85 = sphi 0, %s69
  $region4: #{unet_innermost_forward.2} parent=0 // loop_header_branch
    %11 = sbr.rel (%p9) target = $region8
  $region5: #{unet_innermost_forward.2} parent=0 // loop_body
    %s13 = ssub.s32 %s8, 1
    %s14 = ssub.s32 %s8, 2
    %s15 = sadd.s32 %s8, 1
    %s16 = ssub.s32 %s8, %s15
    %p17 = scmp.eq.s32.totalorder %s16, 0
    %s19 = sadd.s32 %s18, 1
    %s20 = scalar_select %p17, %s18, %s19
    %p23 = pneg %p17
    %p24 = scmp.eq.s32.totalorder %s8, 1
    %p25 = por %p23, %p24
    %p26 = scmp.ne.s32.totalorder %s18, %s21
    %p27 = scmp.eq.s32.totalorder %s8, 0
    %p28 = por %p26, %p27
    %p29 = scmp.ne.s32.totalorder %s18, %s21
    %p30 = scmp.eq.s32.totalorder %s13, 1
    %p31 = por %p29, %p30
    %p32 = scmp.ne.s32.totalorder %s21, %s22
    %p33 = scmp.eq.s32.totalorder %s13, 0
    %p34 = por %p32, %p33
    %p35 = scmp.ne.s32.totalorder %s21, %s22
    %p36 = scmp.eq.s32.totalorder %s14, 1
    %p37 = por %p35, %p36
    %p39 = scmp.ne.s32.totalorder %s22, %s38
    %p40 = scmp.eq.s32.totalorder %s14, 0
    %p41 = por %p39, %p40
    %s43 = sadd.s32 %s42, 1
    %p46 = scmp.eq.s32.totalorder %s8, 1
    %p47 = scmp.ne.s32.totalorder %s42, %s44
    %p48 = scmp.eq.s32.totalorder %s8, 0
    %p49 = por %p47, %p48
    %p50 = scmp.ne.s32.totalorder %s42, %s44
    %p51 = scmp.eq.s32.totalorder %s13, 1
    %p52 = por %p50, %p51
    %p53 = scmp.ne.s32.totalorder %s44, %s45
    %p54 = scmp.eq.s32.totalorder %s13, 0
    %p55 = por %p53, %p54
    %p56 = scmp.ne.s32.totalorder %s44, %s45
    %p57 = scmp.eq.s32.totalorder %s14, 1
    %p58 = por %p56, %p57
    %p60 = scmp.ne.s32.totalorder %s45, %s59
    %p61 = scmp.eq.s32.totalorder %s14, 0
    %p62 = por %p60, %p61
    %s63 = ssub.s32 %s8, %s15
    %p64 = scmp.eq.s32.totalorder %s63, 0
    %s66 = sadd.s32 %s65, 1
    %s67 = scalar_select %p64, %s65, %s66
    %p70 = pneg %p64
    %p71 = scmp.eq.s32.totalorder %s8, 1
    %p72 = por %p70, %p71
    %p73 = scmp.ne.s32.totalorder %s65, %s68
    %p74 = scmp.eq.s32.totalorder %s8, 0
    %p75 = por %p73, %p74
    %p76 = scmp.ne.s32.totalorder %s65, %s68
    %p77 = scmp.eq.s32.totalorder %s13, 1
    %p78 = por %p76, %p77
    %p79 = scmp.ne.s32.totalorder %s68, %s69
    %p80 = scmp.eq.s32.totalorder %s13, 0
    %p81 = por %p79, %p80
    %p82 = scmp.ne.s32.totalorder %s68, %s69
    %p83 = scmp.eq.s32.totalorder %s14, 1
    %p84 = por %p82, %p83
    %p86 = scmp.ne.s32.totalorder %s69, %s85
    %p87 = scmp.eq.s32.totalorder %s14, 0
    %p88 = por %p86, %p87
    %p89 = scmp.le.s32.totalorder 1, %s8
    %p90 = scmp.lt.s32.totalorder %s8, 3
    %p91 = pnand %p89, %p90
    %p92 = pneg %p91
    // Predicated region
    $region9: #{unet_innermost_forward.2} parent=5 // pred_check
      _
    $region10: #{unet_innermost_forward.2} parent=5 // pred_check_branch
      %94 = sbr.rel (%p91) target = $region12
    $region11: #{unet_innermost_forward.2} parent=5 // pred_region
      %s95 = ssub.s32 %s8, 1
      // Predicated region
      $region13: #{unet_innermost_forward.2} parent=11 // pred_check
        %p96 = pneg %p55
      $region14: #{unet_innermost_forward.2} parent=11 // pred_check_branch
        %98 = sbr.rel (%p96) target = $region16
      $region15: #{unet_innermost_forward.2} parent=11 // pred_region
        _
      $region16: #{unet_innermost_forward.2} parent=11 // pred_fallthru
        _
    $region12: #{unet_innermost_forward.2} parent=5 // pred_fallthru
      _
    %p99 = scmp.lt.s32.totalorder %s8, 2
    // Predicated region
    $region17: #{unet_innermost_forward.2} parent=5 // pred_check
      %p100 = pneg %p99
    $region18: #{unet_innermost_forward.2} parent=5 // pred_check_branch
      %102 = sbr.rel (%p100) target = $region20
    $region19: #{unet_innermost_forward.2} parent=5 // pred_region
      // Predicated region
      $region21: #{unet_innermost_forward.2} parent=19 // pred_check
        %p103 = pneg %p28
      $region22: #{unet_innermost_forward.2} parent=19 // pred_check_branch
        %105 = sbr.rel (%p103) target = $region24
      $region23: #{unet_innermost_forward.2} parent=19 // pred_region
        %s106 = smul.u32 8, %s8
        %p107 = scmp.lt.s32.totalorder %s106, 15
        %s108 = scalar_select %p107, %s106, 15
        %s109 = smul.addr %s108, 4
        %s110 = scalar_lea.vmem %s0, %s109
        %s111 = smul.u32 8, %s8
      $region24: #{unet_innermost_forward.2} parent=19 // pred_fallthru
        _
    $region20: #{unet_innermost_forward.2} parent=5 // pred_fallthru
      _
    %p112 = scmp.le.s32.totalorder 1, %s8
    %p113 = scmp.lt.s32.totalorder %s8, 3
    %p114 = pnand %p112, %p113
    %p115 = pneg %p114
    // Predicated region
    $region25: #{unet_innermost_forward.2} parent=5 // pred_check
      _
    $region26: #{unet_innermost_forward.2} parent=5 // pred_check_branch
      %117 = sbr.rel (%p114) target = $region28
    $region27: #{unet_innermost_forward.2} parent=5 // pred_region
      %s118 = ssub.s32 %s8, 1
      %s119 = smul.u32 8, %s13
      %p120 = scmp.lt.s32.totalorder %s119, 15
      %s121 = scalar_select %p120, %s119, 15
      %s122 = smul.addr %s121, 4
      %s123 = scalar_lea.vmem %s0, %s122
      %p124 = pneg %p34
      %p125 = pneg %p31
      %p126 = pneg %p55
      %p127 = pneg %p52
      %p128 = pneg %p81
      %p129 = pneg %p78
      %s130 = smul.u32 8, %s13
      %p131 = scmp.lt.s32.totalorder %s130, 15
      %s132 = scalar_select %p131, %s130, 15
      %s133 = smul.addr %s132, 4
      %s134 = scalar_lea.vmem %s2, %s133
      %s135 = smul.u32 8, %s13
      %p136 = scmp.lt.s32.totalorder %s135, 15
      %s137 = scalar_select %p136, %s135, 15
      %s138 = smul.addr %s137, 4
      %s139 = scalar_lea.vmem %s0, %s138
      %s140 = smul.u32 8, %s13
      %s141 = smul.u32 8, %s13
      %p142 = scmp.lt.s32.totalorder %s141, 15
      %s143 = scalar_select %p142, %s141, 15
      %s144 = smul.addr %s143, 4
      %s145 = scalar_lea.vmem %s2, %s144
      %s146 = smul.u32 8, %s13
      %v148 = vld [vmem:[%s139] sm:$0xf]
      %v149 = vld [vmem:[%s139 + $0x4] sm:$0xf]
      %v150 = vld [vmem:[%s139 + $0x8] sm:$0xf]
      %v151 = vld [vmem:[%s139 + $0xc] sm:$0xf]
      %v152 = vld [vmem:[%s139 + $0x10] sm:$0xf]
      %v153 = vld [vmem:[%s139 + $0x14] sm:$0xf]
      %v154 = vld [vmem:[%s139 + $0x18] sm:$0xf]
      %v155 = vld [vmem:[%s139 + $0x1c] sm:$0xf]
      %v156 = vld [vmem:[%s1] sm:$0xf]
      %v157 = vld [vmem:[%s1 + $0x4] sm:$0xf]
      %v158 = vld [vmem:[%s1 + $0x8] sm:$0xf]
      %v159 = vld [vmem:[%s1 + $0xc] sm:$0xf]
      %v160 = vld [vmem:[%s1 + $0x10] sm:$0xf]
      %v161 = vld [vmem:[%s1 + $0x14] sm:$0xf]
      %v162 = vld [vmem:[%s1 + $0x18] sm:$0xf]
      %v163 = vld [vmem:[%s1 + $0x1c] sm:$0xf]
      %v172 = vunpack.c.l.b16 %v148
      %v173 = vunpack.c.l.b16 %v149
      %v174 = vunpack.c.l.b16 %v150
      %v175 = vunpack.c.l.b16 %v151
      %v176 = vunpack.c.l.b16 %v152
      %v177 = vunpack.c.l.b16 %v153
      %v178 = vunpack.c.l.b16 %v154
      %v179 = vunpack.c.l.b16 %v155
      %v180 = vpack.c.b16 %v173, %v172
      %v181 = vpack.c.b16 %v175, %v174
      %v182 = vpack.c.b16 %v177, %v176
      %v183 = vpack.c.b16 %v179, %v178
      %v192 = vunpack.c.l.b16 %v156
      %v193 = vunpack.c.l.b16 %v157
      %v194 = vunpack.c.l.b16 %v158
      %v195 = vunpack.c.l.b16 %v159
      %v196 = vunpack.c.l.b16 %v160
      %v197 = vunpack.c.l.b16 %v161
      %v198 = vunpack.c.l.b16 %v162
      %v199 = vunpack.c.l.b16 %v163
      %v200 = vpack.c.b16 %v193, %v192
      %v201 = vpack.c.b16 %v195, %v194
      %v202 = vpack.c.b16 %v197, %v196
      %v203 = vpack.c.b16 %v199, %v198
      %vm208 = vcmask 523264
      %v210 = vsel %vm208, %v180, 0
      %v213 = vsel %vm208, %v181, 0
      %v216 = vsel %vm208, %v182, 0
      %v219 = vsel %vm208, %v183, 0
      %221 = vmatpush.bf16.msra.mxu0 0
      %222 = vmatpush.bf16.msra.mxu0 0
      %223 = vmatpush.bf16.msra.mxu0 0
      %224 = vmatpush.bf16.msra.mxu0 0
      %225 = vmatpush.bf16.msra.mxu0 %v203
      %226 = vmatpush.bf16.msra.mxu0 %v202
      %227 = vmatpush.bf16.msra.mxu0 %v201
      %228 = vmatpush.bf16.msra.mxu0 %v200
      %229 = vmatmul.bf16.gmra.mxu0 %v210
      %v230 = vpop.f32.mrf.mxu0
      %v231 = vadd.f32 0.0, %v230
      %v232 = vpop.f32.mrf.mxu0
      %v233 = vadd.f32 0.0, %v232
      %234 = vmatmul.bf16.gmra.mxu0 %v213
      %v235 = vpop.f32.mrf.mxu0
      %v236 = vadd.f32 0.0, %v235
      %v237 = vpop.f32.mrf.mxu0
      %v238 = vadd.f32 0.0, %v237
      %239 = vmatmul.bf16.gmra.mxu0 %v216
      %v240 = vpop.f32.mrf.mxu0
      %v241 = vadd.f32 0.0, %v240
      %v242 = vpop.f32.mrf.mxu0
      %v243 = vadd.f32 0.0, %v242
      %244 = vmatmul.bf16.gmra.mxu0 %v219
      %v245 = vpop.f32.mrf.mxu0
      %v246 = vadd.f32 0.0, %v245
      %v247 = vpop.f32.mrf.mxu0
      %v248 = vadd.f32 0.0, %v247
      %249 = vdwg.mxu0
      %v250 = vmax.f32 %v231, 0.0
      %v251 = vmax.f32 %v233, 0.0
      %v252 = vmax.f32 %v236, 0.0
      %v253 = vmax.f32 %v238, 0.0
      %v254 = vmax.f32 %v241, 0.0
      %v255 = vmax.f32 %v243, 0.0
      %v256 = vmax.f32 %v246, 0.0
      %v257 = vmax.f32 %v248, 0.0
      %v258 = vpack.c.bf16 %v250, %v250
      %v259 = vpack.c.bf16 %v251, %v251
      %v260 = vpack.c.bf16 %v252, %v252
      %v261 = vpack.c.bf16 %v253, %v253
      %v262 = vpack.c.bf16 %v254, %v254
      %v263 = vpack.c.bf16 %v255, %v255
      %v264 = vpack.c.bf16 %v256, %v256
      %v265 = vpack.c.bf16 %v257, %v257
      %266 = vst [vmem:[%s145] sm:$0xf] %v258
      %267 = vst [vmem:[%s145 + $0x4] sm:$0xf] %v259
      %268 = vst [vmem:[%s145 + $0x8] sm:$0xf] %v260
      %269 = vst [vmem:[%s145 + $0xc] sm:$0xf] %v261
      %270 = vst [vmem:[%s145 + $0x10] sm:$0xf] %v262
      %271 = vst [vmem:[%s145 + $0x14] sm:$0xf] %v263
      %272 = vst [vmem:[%s145 + $0x18] sm:$0xf] %v264
      %273 = vst [vmem:[%s145 + $0x1c] sm:$0xf] %v265
      %s274 = smul.u32 8, %s13
      %p275 = scmp.lt.s32.totalorder %s274, 15
      %s276 = scalar_select %p275, %s274, 15
      %s277 = smul.addr %s276, 4
      %s278 = scalar_lea.vmem %s2, %s277
      // Predicated region
      $region29: #{unet_innermost_forward.2} parent=27 // pred_check
        %p279 = pneg %p78
      $region30: #{unet_innermost_forward.2} parent=27 // pred_check_branch
        %281 = sbr.rel (%p279) target = $region32
      $region31: #{unet_innermost_forward.2} parent=27 // pred_region
        %s282 = smul.u32 8, %s13
      $region32: #{unet_innermost_forward.2} parent=27 // pred_fallthru
        _
    $region28: #{unet_innermost_forward.2} parent=5 // pred_fallthru
      _
    %p283 = scmp.le.s32.totalorder 2, %s8
    // Predicated region
    $region33: #{unet_innermost_forward.2} parent=5 // pred_check
      %p284 = pneg %p283
    $region34: #{unet_innermost_forward.2} parent=5 // pred_check_branch
      %286 = sbr.rel (%p284) target = $region36
    $region35: #{unet_innermost_forward.2} parent=5 // pred_region
      %s287 = ssub.s32 %s8, 2
      // Predicated region
      $region37: #{unet_innermost_forward.2} parent=35 // pred_check
        %p288 = pneg %p84
      $region38: #{unet_innermost_forward.2} parent=35 // pred_check_branch
        %290 = sbr.rel (%p288) target = $region40
      $region39: #{unet_innermost_forward.2} parent=35 // pred_region
        %s291 = smul.u32 8, %s14
        %p292 = scmp.lt.s32.totalorder %s291, 15
        %s293 = scalar_select %p292, %s291, 15
        %s294 = smul.addr %s293, 4
        %s295 = scalar_lea.vmem %s2, %s294
      $region40: #{unet_innermost_forward.2} parent=35 // pred_fallthru
        _
    $region36: #{unet_innermost_forward.2} parent=5 // pred_fallthru
      _
  $region6: #{unet_innermost_forward.2} parent=0 // loop_footer
    %s12 = sadd.s32 1, %s8
  $region7: #{unet_innermost_forward.2} parent=0 // loop_footer_branch
    %7 = sbr.rel target = $region3
  $region8: #{unet_innermost_forward.2} parent=0 // loop_exit
    _

// kernel: unet_innermost_forward.3
$region0: #{unet_innermost_forward.3}
  #allocation0 [shape = 'u32[]', space=smem, size = 0x4, offset = 0x4, fixed_abs, tag = 'smem constant byte address 0x4 - core index']
  #allocation1 [shape = 'u32[72,128]{1,0:T(1,128)}', space=vmem, size = 0x9000, scoped, tag = 'internal scratch']
  %s0 = inlined_call_operand.vmem [shape: bf16[128,72], index: 0, kind: input, shape index: {}]
  %s1 = inlined_call_operand.vmem [shape: bf16[72,128], index: 1, kind: input, shape index: {}]
  %s2 = inlined_call_operand.vmem [shape: bf16[128,128], index: 2, kind: output, shape index: {0}]
  %s3 = inlined_call_operand.vmem [shape: f32[16,128], index: 3, kind: output, shape index: {1}]
  %s4 = inlined_call_operand.vmem [shape: f32[16,128], index: 4, kind: output, shape index: {2}]
  %5 = xla_tuple %s2, %s3, %s4
  %s6 = sld [smem:[#allocation0]]
  $region61: #{unet_innermost_forward.3} parent=0
    _
  %s8 = ssub.s32 1, %s6
  %s9 = scalar_select 0, %s8, %s6
  loop: start=0, step=1, limit=4
  $region2: #{unet_innermost_forward.3} parent=0 // loop_pre_header
    _
  $region3: #{unet_innermost_forward.3} parent=0 // loop_header
    %s11 = sphi 0, %s15
    %p12 = scmp.ge.s32.totalorder %s11, 4
    %s18 = sphi 0, %s30
    %s19 = sphi 0, %s26
    %s20 = sphi 0, %s18
    %s21 = sphi 0, %s19
    %s22 = sphi 0, %s20
    %s23 = sphi 0, %s21
    %s35 = sphi 0, %s37
    %s38 = sphi 0, %s35
    %s39 = sphi 0, %s38
    %s55 = sphi 0, %s39
    %s59 = sphi 0, %s59
    %s61 = sphi 0, %s59
    %s62 = sphi 0, %s61
    %s76 = sphi 0, %s62
    %s84 = sphi 0, %s86
    %s87 = sphi 0, %s84
    %s88 = sphi 0, %s87
    %s104 = sphi 0, %s88
    %s110 = sphi 0, %s112
    %s113 = sphi 0, %s110
    %s114 = sphi 0, %s113
    %s130 = sphi 0, %s114
    %s136 = sphi 0, %s138
    %s139 = sphi 0, %s136
    %s140 = sphi 0, %s139
    %s156 = sphi 0, %s140
  $region4: #{unet_innermost_forward.3} parent=0 // loop_header_branch
    %14 = sbr.rel (%p12) target = $region8
  $region5: #{unet_innermost_forward.3} parent=0 // loop_body
    %s16 = ssub.s32 %s11, 1
    %s17 = ssub.s32 %s11, 2
    %s24 = sadd.s32 1, %s19
    %p25 = scmp.ge.s32.totalorder %s24, 1
    %s26 = scalar_select %p25, 0, %s24
    %s27 = sadd.s32 1, %s18
    %s28 = scalar_select %p25, %s27, %s18
    %p29 = scmp.ge.s32.totalorder %s28, 2
    %s30 = scalar_select %p29, 0, %s28
    %s31 = sadd.s32 %s18, %s19
    %s32 = sadd.s32 %s30, %s26
    %s33 = ssub.s32 %s31, %s32
    %p34 = scmp.eq.s32.totalorder %s33, 0
    %s36 = sadd.s32 %s35, 1
    %s37 = scalar_select %p34, %s35, %s36
    %p40 = pneg %p34
    %p41 = scmp.eq.s32.totalorder %s11, 1
    %p42 = por %p40, %p41
    %p43 = scmp.ne.s32.totalorder %s35, %s38
    %p44 = scmp.eq.s32.totalorder %s11, 0
    %p45 = por %p43, %p44
    %p46 = scmp.ne.s32.totalorder %s35, %s38
    %p47 = scmp.eq.s32.totalorder %s16, 1
    %p48 = por %p46, %p47
    %p49 = scmp.ne.s32.totalorder %s38, %s39
    %p50 = scmp.eq.s32.totalorder %s16, 0
    %p51 = por %p49, %p50
    %p52 = scmp.ne.s32.totalorder %s38, %s39
    %p53 = scmp.eq.s32.totalorder %s17, 1
    %p54 = por %p52, %p53
    %p56 = scmp.ne.s32.totalorder %s39, %s55
    %p57 = scmp.eq.s32.totalorder %s17, 0
    %p58 = por %p56, %p57
    %s60 = sadd.s32 %s59, 1
    %p63 = scmp.eq.s32.totalorder %s11, 1
    %p64 = scmp.ne.s32.totalorder %s59, %s61
    %p65 = scmp.eq.s32.totalorder %s11, 0
    %p66 = por %p64, %p65
    %p67 = scmp.ne.s32.totalorder %s59, %s61
    %p68 = scmp.eq.s32.totalorder %s16, 1
    %p69 = por %p67, %p68
    %p70 = scmp.ne.s32.totalorder %s61, %s62
    %p71 = scmp.eq.s32.totalorder %s16, 0
    %p72 = por %p70, %p71
    %p73 = scmp.ne.s32.totalorder %s61, %s62
    %p74 = scmp.eq.s32.totalorder %s17, 1
    %p75 = por %p73, %p74
    %p77 = scmp.ne.s32.totalorder %s62, %s76
    %p78 = scmp.eq.s32.totalorder %s17, 0
    %p79 = por %p77, %p78
    %s80 = sadd.s32 %s18, %s19
    %s81 = sadd.s32 %s30, %s26
    %s82 = ssub.s32 %s80, %s81
    %p83 = scmp.eq.s32.totalorder %s82, 0
    %s85 = sadd.s32 %s84, 1
    %s86 = scalar_select %p83, %s84, %s85
    %p89 = pneg %p83
    %p90 = scmp.eq.s32.totalorder %s11, 1
    %p91 = por %p89, %p90
    %p92 = scmp.ne.s32.totalorder %s84, %s87
    %p93 = scmp.eq.s32.totalorder %s11, 0
    %p94 = por %p92, %p93
    %p95 = scmp.ne.s32.totalorder %s84, %s87
    %p96 = scmp.eq.s32.totalorder %s16, 1
    %p97 = por %p95, %p96
    %p98 = scmp.ne.s32.totalorder %s87, %s88
    %p99 = scmp.eq.s32.totalorder %s16, 0
    %p100 = por %p98, %p99
    %p101 = scmp.ne.s32.totalorder %s87, %s88
    %p102 = scmp.eq.s32.totalorder %s17, 1
    %p103 = por %p101, %p102
    %p105 = scmp.ne.s32.totalorder %s88, %s104
    %p106 = scmp.eq.s32.totalorder %s17, 0
    %p107 = por %p105, %p106
    %s108 = ssub.s32 %s18, %s30
    %p109 = scmp.eq.s32.totalorder %s108, 0
    %s111 = sadd.s32 %s110, 1
    %s112 = scalar_select %p109, %s110, %s111
    %p115 = pneg %p109
    %p116 = scmp.eq.s32.totalorder %s11, 1
    %p117 = por %p115, %p116
    %p118 = scmp.ne.s32.totalorder %s110, %s113
    %p119 = scmp.eq.s32.totalorder %s11, 0
    %p120 = por %p118, %p119
    %p121 = scmp.ne.s32.totalorder %s110, %s113
    %p122 = scmp.eq.s32.totalorder %s16, 1
    %p123 = por %p121, %p122
    %p124 = scmp.ne.s32.totalorder %s113, %s114
    %p125 = scmp.eq.s32.totalorder %s16, 0
    %p126 = por %p124, %p125
    %p127 = scmp.ne.s32.totalorder %s113, %s114
    %p128 = scmp.eq.s32.totalorder %s17, 1
    %p129 = por %p127, %p128
    %p131 = scmp.ne.s32.totalorder %s114, %s130
    %p132 = scmp.eq.s32.totalorder %s17, 0
    %p133 = por %p131, %p132
    %s134 = ssub.s32 %s18, %s30
    %p135 = scmp.eq.s32.totalorder %s134, 0
    %s137 = sadd.s32 %s136, 1
    %s138 = scalar_select %p135, %s136, %s137
    %p141 = pneg %p135
    %p142 = scmp.eq.s32.totalorder %s11, 1
    %p143 = por %p141, %p142
    %p144 = scmp.ne.s32.totalorder %s136, %s139
    %p145 = scmp.eq.s32.totalorder %s11, 0
    %p146 = por %p144, %p145
    %p147 = scmp.ne.s32.totalorder %s136, %s139
    %p148 = scmp.eq.s32.totalorder %s16, 1
    %p149 = por %p147, %p148
    %p150 = scmp.ne.s32.totalorder %s139, %s140
    %p151 = scmp.eq.s32.totalorder %s16, 0
    %p152 = por %p150, %p151
    %p153 = scmp.ne.s32.totalorder %s139, %s140
    %p154 = scmp.eq.s32.totalorder %s17, 1
    %p155 = por %p153, %p154
    %p157 = scmp.ne.s32.totalorder %s140, %s156
    %p158 = scmp.eq.s32.totalorder %s17, 0
    %p159 = por %p157, %p158
    %p160 = scmp.le.s32.totalorder 1, %s11
    %p161 = scmp.lt.s32.totalorder %s11, 3
    %p162 = pnand %p160, %p161
    %p163 = pneg %p162
    // Predicated region
    $region9: #{unet_innermost_forward.3} parent=5 // pred_check
      _
    $region10: #{unet_innermost_forward.3} parent=5 // pred_check_branch
      %165 = sbr.rel (%p162) target = $region12
    $region11: #{unet_innermost_forward.3} parent=5 // pred_region
      %s166 = ssub.s32 %s11, 1
      // Predicated region
      $region13: #{unet_innermost_forward.3} parent=11 // pred_check
        %p167 = pneg %p72
      $region14: #{unet_innermost_forward.3} parent=11 // pred_check_branch
        %169 = sbr.rel (%p167) target = $region16
      $region15: #{unet_innermost_forward.3} parent=11 // pred_region
        _
      $region16: #{unet_innermost_forward.3} parent=11 // pred_fallthru
        _
    $region12: #{unet_innermost_forward.3} parent=5 // pred_fallthru
      _
    %p170 = scmp.lt.s32.totalorder %s11, 2
    // Predicated region
    $region17: #{unet_innermost_forward.3} parent=5 // pred_check
      %p171 = pneg %p170
    $region18: #{unet_innermost_forward.3} parent=5 // pred_check_branch
      %173 = sbr.rel (%p171) target = $region20
    $region19: #{unet_innermost_forward.3} parent=5 // pred_region
      // Predicated region
      $region21: #{unet_innermost_forward.3} parent=19 // pred_check
        %p174 = pneg %p45
      $region22: #{unet_innermost_forward.3} parent=19 // pred_check_branch
        %176 = sbr.rel (%p174) target = $region24
      $region23: #{unet_innermost_forward.3} parent=19 // pred_region
        %s177 = sadd.s32 %s18, %s19
        %s178 = smul.u32 8, %s177
        %p179 = scmp.lt.s32.totalorder %s178, 15
        %s180 = scalar_select %p179, %s178, 15
        %s181 = smul.addr %s180, 4
        %s182 = scalar_lea.vmem %s0, %s181
        %s183 = sadd.s32 %s18, %s19
        %s184 = smul.u32 8, %s183
      $region24: #{unet_innermost_forward.3} parent=19 // pred_fallthru
        _
    $region20: #{unet_innermost_forward.3} parent=5 // pred_fallthru
      _
    %p185 = scmp.le.s32.totalorder 1, %s11
    %p186 = scmp.lt.s32.totalorder %s11, 3
    %p187 = pnand %p185, %p186
    %p188 = pneg %p187
    // Predicated region
    $region25: #{unet_innermost_forward.3} parent=5 // pred_check
      _
    $region26: #{unet_innermost_forward.3} parent=5 // pred_check_branch
      %190 = sbr.rel (%p187) target = $region28
    $region27: #{unet_innermost_forward.3} parent=5 // pred_region
      %s191 = ssub.s32 %s11, 1
      %s192 = sadd.s32 %s20, %s21
      %s193 = smul.u32 8, %s192
      %p194 = scmp.lt.s32.totalorder %s193, 15
      %s195 = scalar_select %p194, %s193, 15
      %s196 = smul.addr %s195, 4
      %s197 = scalar_lea.vmem %s0, %s196
      %p198 = pneg %p51
      %p199 = pneg %p48
      %p200 = pneg %p72
      %p201 = pneg %p69
      %p202 = pneg %p100
      %p203 = pneg %p97
      %s204 = sadd.s32 %s20, %s21
      %s205 = smul.u32 8, %s204
      %p206 = scmp.lt.s32.totalorder %s205, 15
      %s207 = scalar_select %p206, %s205, 15
      %s208 = smul.addr %s207, 4
      %s209 = scalar_lea.vmem %s2, %s208
      %p210 = pneg %p126
      %p211 = pneg %p123
      %p212 = scmp.lt.s32.totalorder %s20, 1
      %s213 = scalar_select %p212, %s20, 1
      %s214 = smul.addr %s213, 8
      %s215 = scalar_lea.vmem %s3, %s214
      %p216 = pneg %p152
      %p217 = pneg %p149
      %p218 = scmp.lt.s32.totalorder %s20, 1
      %s219 = scalar_select %p218, %s20, 1
      %s220 = smul.addr %s219, 8
      %s221 = scalar_lea.vmem %s4, %s220
      %s222 = sadd.s32 %s20, %s21
      %s223 = smul.u32 8, %s222
      %p224 = scmp.lt.s32.totalorder %s223, 15
      %s225 = scalar_select %p224, %s223, 15
      %s226 = smul.addr %s225, 4
      %s227 = scalar_lea.vmem %s0, %s226
      %s228 = sadd.s32 %s20, %s21
      %s229 = smul.u32 8, %s228
      %s230 = sadd.s32 %s20, %s21
      %s231 = smul.u32 8, %s230
      %p232 = scmp.lt.s32.totalorder %s231, 15
      %s233 = scalar_select %p232, %s231, 15
      %s234 = smul.addr %s233, 4
      %s235 = scalar_lea.vmem %s2, %s234
      %s236 = sadd.s32 %s20, %s21
      %s237 = smul.u32 8, %s236
      %p238 = scmp.lt.s32.totalorder %s20, 1
      %s239 = scalar_select %p238, %s20, 1
      %s240 = smul.addr %s239, 8
      %s241 = scalar_lea.vmem %s3, %s240
      %p242 = scmp.lt.s32.totalorder %s20, 1
      %s243 = scalar_select %p242, %s20, 1
      %s244 = smul.addr %s243, 8
      %s245 = scalar_lea.vmem %s4, %s244
      %v247 = vld [vmem:[%s227] sm:$0xf]
      %v248 = vld [vmem:[%s227 + $0x4] sm:$0xf]
      %v249 = vld [vmem:[%s227 + $0x8] sm:$0xf]
      %v250 = vld [vmem:[%s227 + $0xc] sm:$0xf]
      %v251 = vld [vmem:[%s227 + $0x10] sm:$0xf]
      %v252 = vld [vmem:[%s227 + $0x14] sm:$0xf]
      %v253 = vld [vmem:[%s227 + $0x18] sm:$0xf]
      %v254 = vld [vmem:[%s227 + $0x1c] sm:$0xf]
      %v255 = vld [vmem:[%s1] sm:$0xf]
      %v256 = vld [vmem:[%s1 + $0x4] sm:$0xf]
      %v257 = vld [vmem:[%s1 + $0x8] sm:$0xf]
      %v258 = vld [vmem:[%s1 + $0xc] sm:$0xf]
      %v259 = vld [vmem:[%s1 + $0x10] sm:$0xf]
      %v260 = vld [vmem:[%s1 + $0x14] sm:$0xf]
      %v261 = vld [vmem:[%s1 + $0x18] sm:$0xf]
      %v262 = vld [vmem:[%s1 + $0x1c] sm:$0xf]
      %v263 = vld [vmem:[%s1 + $0x20] sm:$0xf]
      %v272 = vunpack.c.l.b16 %v247
      %v273 = vunpack.c.l.b16 %v248
      %v274 = vunpack.c.l.b16 %v249
      %v275 = vunpack.c.l.b16 %v250
      %v276 = vunpack.c.l.b16 %v251
      %v277 = vunpack.c.l.b16 %v252
      %v278 = vunpack.c.l.b16 %v253
      %v279 = vunpack.c.l.b16 %v254
      %v280 = vpack.c.b16 %v273, %v272
      %v281 = vpack.c.b16 %v275, %v274
      %v282 = vpack.c.b16 %v277, %v276
      %v283 = vpack.c.b16 %v279, %v278
      %v293 = vunpack.c.l.b16 %v255
      %v294 = vunpack.c.l.b16 %v256
      %v295 = vunpack.c.l.b16 %v257
      %v296 = vunpack.c.l.b16 %v258
      %v297 = vunpack.c.l.b16 %v259
      %v298 = vunpack.c.l.b16 %v260
      %v299 = vunpack.c.l.b16 %v261
      %v300 = vunpack.c.l.b16 %v262
      %v301 = vunpack.c.l.b16 %v263
      %v302 = vpack.c.b16 %v294, %v293
      %v303 = vpack.c.b16 %v296, %v295
      %v304 = vpack.c.b16 %v298, %v297
      %v305 = vpack.c.b16 %v300, %v299
      %v306 = vpack.c.b16 %v301, %v301
      %vm311 = vcmask 588800
      %v313 = vsel %vm311, %v280, 0
      %v316 = vsel %vm311, %v281, 0
      %v319 = vsel %vm311, %v282, 0
      %v322 = vsel %vm311, %v283, 0
      %vm324 = vcmask 1043456
      %v326 = vsel %vm324, %v306, 0
      %328 = vmatpush.bf16.msra.mxu0 0
      %329 = vmatpush.bf16.msra.mxu0 0
      %330 = vmatpush.bf16.msra.mxu0 0
      %331 = vmatpush.bf16.msra.mxu0 %v326
      %332 = vmatpush.bf16.msra.mxu0 %v305
      %333 = vmatpush.bf16.msra.mxu0 %v304
      %334 = vmatpush.bf16.msra.mxu0 %v303
      %335 = vmatpush.bf16.msra.mxu0 %v302
      %336 = vmatmul.bf16.gmra.mxu0 %v313
      %v337 = vpop.f32.mrf.mxu0
      %v338 = vadd.f32 0.0, %v337
      %v339 = vpop.f32.mrf.mxu0
      %v340 = vadd.f32 0.0, %v339
      %341 = vmatmul.bf16.gmra.mxu0 %v316
      %v342 = vpop.f32.mrf.mxu0
      %v343 = vadd.f32 0.0, %v342
      %v344 = vpop.f32.mrf.mxu0
      %v345 = vadd.f32 0.0, %v344
      %346 = vmatmul.bf16.gmra.mxu0 %v319
      %v347 = vpop.f32.mrf.mxu0
      %v348 = vadd.f32 0.0, %v347
      %v349 = vpop.f32.mrf.mxu0
      %v350 = vadd.f32 0.0, %v349
      %351 = vmatmul.bf16.gmra.mxu0 %v322
      %v352 = vpop.f32.mrf.mxu0
      %v353 = vadd.f32 0.0, %v352
      %v354 = vpop.f32.mrf.mxu0
      %v355 = vadd.f32 0.0, %v354
      %356 = vdwg.mxu0
      %v357 = vpack.c.bf16 %v338, %v338
      %v358 = vpack.c.bf16 %v340, %v340
      %v359 = vpack.c.bf16 %v343, %v343
      %v360 = vpack.c.bf16 %v345, %v345
      %v361 = vpack.c.bf16 %v348, %v348
      %v362 = vpack.c.bf16 %v350, %v350
      %v363 = vpack.c.bf16 %v353, %v353
      %v364 = vpack.c.bf16 %v355, %v355
      %365 = vst [vmem:[%s235] sm:$0xf] %v357
      %366 = vst [vmem:[%s235 + $0x4] sm:$0xf] %v358
      %367 = vst [vmem:[%s235 + $0x8] sm:$0xf] %v359
      %368 = vst [vmem:[%s235 + $0xc] sm:$0xf] %v360
      %369 = vst [vmem:[%s235 + $0x10] sm:$0xf] %v361
      %370 = vst [vmem:[%s235 + $0x14] sm:$0xf] %v362
      %371 = vst [vmem:[%s235 + $0x18] sm:$0xf] %v363
      %372 = vst [vmem:[%s235 + $0x1c] sm:$0xf] %v364
      %p373 = scmp.eq.s32.totalorder %s21, 0
      // Predicated region
      $region29: #{unet_innermost_forward.3} parent=27 // pred_check
        %p374 = pneg %p373
      $region30: #{unet_innermost_forward.3} parent=27 // pred_check_branch
        %376 = sbr.rel (%p374) target = $region32
      $region31: #{unet_innermost_forward.3} parent=27 // pred_region
        %377 = vst [vmem:[%s241] sm:$0xff] 0.0
        %378 = vst [vmem:[%s245] sm:$0xff] 0.0
      $region32: #{unet_innermost_forward.3} parent=27 // pred_fallthru
        _
      %v379 = vld [vmem:[%s241] sm:$0xff]
      %v380 = vadd.f32 %v338, %v340
      %v381 = vadd.f32 %v380, %v343
      %v382 = vadd.f32 %v381, %v345
      %v383 = vadd.f32 %v382, %v348
      %v384 = vadd.f32 %v383, %v350
      %v385 = vadd.f32 %v384, %v353
      %v386 = vadd.f32 %v385, %v355
      %v387 = vrot.slane %v386, 4
      %v388 = vadd.f32 %v386, %v387
      %v389 = vrot.slane %v388, 2
      %v390 = vadd.f32 %v388, %v389
      %v391 = vrot.slane %v390, 1
      %v392 = vadd.f32 %v390, %v391
      %v393 = vadd.f32 %v379, %v392
      %394 = vst [vmem:[%s241] sm:$0xff] %v393
      %v395 = vld [vmem:[%s245] sm:$0xff]
      %v396 = vmul.f32 %v338, %v338
      %v397 = vmul.f32 %v340, %v340
      %v398 = vmul.f32 %v343, %v343
      %v399 = vmul.f32 %v345, %v345
      %v400 = vmul.f32 %v348, %v348
      %v401 = vmul.f32 %v350, %v350
      %v402 = vmul.f32 %v353, %v353
      %v403 = vmul.f32 %v355, %v355
      %v404 = vadd.f32 %v396, %v397
      %v405 = vadd.f32 %v404, %v398
      %v406 = vadd.f32 %v405, %v399
      %v407 = vadd.f32 %v406, %v400
      %v408 = vadd.f32 %v407, %v401
      %v409 = vadd.f32 %v408, %v402
      %v410 = vadd.f32 %v409, %v403
      %v411 = vrot.slane %v410, 4
      %v412 = vadd.f32 %v410, %v411
      %v413 = vrot.slane %v412, 2
      %v414 = vadd.f32 %v412, %v413
      %v415 = vrot.slane %v414, 1
      %v416 = vadd.f32 %v414, %v415
      %v417 = vadd.f32 %v395, %v416
      %418 = vst [vmem:[%s245] sm:$0xff] %v417
      %s419 = sadd.s32 %s20, %s21
      %s420 = smul.u32 8, %s419
      %p421 = scmp.lt.s32.totalorder %s420, 15
      %s422 = scalar_select %p421, %s420, 15
      %s423 = smul.addr %s422, 4
      %s424 = scalar_lea.vmem %s2, %s423
      %p425 = scmp.lt.s32.totalorder %s20, 1
      %s426 = scalar_select %p425, %s20, 1
      %s427 = smul.addr %s426, 8
      %s428 = scalar_lea.vmem %s3, %s427
      %p429 = scmp.lt.s32.totalorder %s20, 1
      %s430 = scalar_select %p429, %s20, 1
      %s431 = smul.addr %s430, 8
      %s432 = scalar_lea.vmem %s4, %s431
      // Predicated region
      $region33: #{unet_innermost_forward.3} parent=27 // pred_check
        %p433 = pneg %p97
      $region34: #{unet_innermost_forward.3} parent=27 // pred_check_branch
        %435 = sbr.rel (%p433) target = $region36
      $region35: #{unet_innermost_forward.3} parent=27 // pred_region
        %s436 = sadd.s32 %s20, %s21
        %s437 = smul.u32 8, %s436
      $region36: #{unet_innermost_forward.3} parent=27 // pred_fallthru
        _
      // Predicated region
      $region37: #{unet_innermost_forward.3} parent=27 // pred_check
        %p438 = pneg %p123
      $region38: #{unet_innermost_forward.3} parent=27 // pred_check_branch
        %440 = sbr.rel (%p438) target = $region40
      $region39: #{unet_innermost_forward.3} parent=27 // pred_region
        _
      $region40: #{unet_innermost_forward.3} parent=27 // pred_fallthru
        _
      // Predicated region
      $region41: #{unet_innermost_forward.3} parent=27 // pred_check
        %p441 = pneg %p149
      $region42: #{unet_innermost_forward.3} parent=27 // pred_check_branch
        %443 = sbr.rel (%p441) target = $region44
      $region43: #{unet_innermost_forward.3} parent=27 // pred_region
        _
      $region44: #{unet_innermost_forward.3} parent=27 // pred_fallthru
        _
    $region28: #{unet_innermost_forward.3} parent=5 // pred_fallthru
      _
    %p444 = scmp.le.s32.totalorder 2, %s11
    // Predicated region
    $region45: #{unet_innermost_forward.3} parent=5 // pred_check
      %p445 = pneg %p444
    $region46: #{unet_innermost_forward.3} parent=5 // pred_check_branch
      %447 = sbr.rel (%p445) target = $region48
    $region47: #{unet_innermost_forward.3} parent=5 // pred_region
      %s448 = ssub.s32 %s11, 2
      // Predicated region
      $region49: #{unet_innermost_forward.3} parent=47 // pred_check
        %p449 = pneg %p103
      $region50: #{unet_innermost_forward.3} parent=47 // pred_check_branch
        %451 = sbr.rel (%p449) target = $region52
      $region51: #{unet_innermost_forward.3} parent=47 // pred_region
        %s452 = sadd.s32 %s22, %s23
        %s453 = smul.u32 8, %s452
        %p454 = scmp.lt.s32.totalorder %s453, 15
        %s455 = scalar_select %p454, %s453, 15
        %s456 = smul.addr %s455, 4
        %s457 = scalar_lea.vmem %s2, %s456
      $region52: #{unet_innermost_forward.3} parent=47 // pred_fallthru
        _
      // Predicated region
      $region53: #{unet_innermost_forward.3} parent=47 // pred_check
        %p458 = pneg %p129
      $region54: #{unet_innermost_forward.3} parent=47 // pred_check_branch
        %460 = sbr.rel (%p458) target = $region56
      $region55: #{unet_innermost_forward.3} parent=47 // pred_region
        %p461 = scmp.lt.s32.totalorder %s22, 1
        %s462 = scalar_select %p461, %s22, 1
        %s463 = smul.addr %s462, 8
        %s464 = scalar_lea.vmem %s3, %s463
      $region56: #{unet_innermost_forward.3} parent=47 // pred_fallthru
        _
      // Predicated region
      $region57: #{unet_innermost_forward.3} parent=47 // pred_check
        %p465 = pneg %p155
      $region58: #{unet_innermost_forward.3} parent=47 // pred_check_branch
        %467 = sbr.rel (%p465) target = $region60
      $region59: #{unet_innermost_forward.3} parent=47 // pred_region
        %p468 = scmp.lt.s32.totalorder %s22, 1
        %s469 = scalar_select %p468, %s22, 1
        %s470 = smul.addr %s469, 8
        %s471 = scalar_lea.vmem %s4, %s470
      $region60: #{unet_innermost_forward.3} parent=47 // pred_fallthru
        _
    $region48: #{unet_innermost_forward.3} parent=5 // pred_fallthru
      _
  $region6: #{unet_innermost_forward.3} parent=0 // loop_footer
    %s15 = sadd.s32 1, %s11
  $region7: #{unet_innermost_forward.3} parent=0 // loop_footer_branch
    %10 = sbr.rel target = $region3
  $region8: #{unet_innermost_forward.3} parent=0 // loop_exit
    _

</llo_original>
